<compile_context>
chip_gen: v5e
topology: v5e:2x2
jax: 0.10.0
libtpu: 0.0.40
codegen_flags: <defaults>
</compile_context>

<pallas_src>
import functools

import numpy as np
import jax
import jax.numpy as jnp
from jax.experimental import pallas as pl
from jax.experimental.pallas import tpu as pltpu


def _round_up(x: int, m: int) -> int:
    return -(-x // m) * m


def _pack_kernel(starts_ref, counts_ref, src_ref, out_ref, buf, sem, *, tl):
    """Copy one (tl, D) slab of one group's rows into the padded output.

    starts_ref: (G,) int32 SMEM  row offset of each group in the permuted src
    counts_ref: (G,) int32 SMEM  number of valid rows of each group
    src_ref:    (N + L_span, D)  permuted batch (+ zero tail), raw HBM ref
    out_ref:    (1, tl, D)       padded output block for (group g, L-tile lt)
    buf:        (tl, D)          VMEM staging buffer
    sem:        ()               DMA semaphore
    """
    g = pl.program_id(0)
    lt = pl.program_id(1)

    start = starts_ref[g] + lt * tl          # dynamic row offset into src
    cp = pltpu.make_async_copy(src_ref.at[pl.ds(start, tl), :], buf, sem)
    cp.start()
    cp.wait()

    d = buf.shape[1]
    # Zero out rows past this group's length (they were over-read from the
    # next group / the zero tail).
    row = jax.lax.broadcasted_iota(jnp.int32, (tl, d), 0) + lt * tl
    keep = row < counts_ref[g]
    data = buf[...]
    out_ref[0] = jnp.where(keep, data, jnp.zeros_like(data))


_TABLE_CACHE = {}


def _group_tables(seq_np: np.ndarray):
    """Host-side group structure (data-dependent shapes -> cannot be traced)."""
    key = (seq_np.tobytes(), seq_np.dtype.str, seq_np.shape)
    hit = _TABLE_CACHE.get(key)
    if hit is not None:
        return hit

    n = int(seq_np.shape[0])
    order = np.argsort(seq_np, kind="stable")          # stable: keeps in-group order
    sorted_ids = seq_np[order]
    _, counts = np.unique(sorted_ids, return_counts=True)
    counts = counts.astype(np.int64)
    g = int(counts.shape[0])
    l = int(counts.max())
    starts = np.zeros(g, dtype=np.int64)
    starts[1:] = np.cumsum(counts)[:-1]
    rank = np.arange(n, dtype=np.int64) - np.repeat(starts, counts)
    # flat output slot (stride L) of each *permuted* row
    dest = np.repeat(np.arange(g, dtype=np.int64) * l, counts) + rank

    out = (order.astype(np.int32), starts.astype(np.int32),
           counts.astype(np.int32), dest.astype(np.int32), g, l)
    _TABLE_CACHE[key] = out
    return out


def unpad_sequences(batch, sequence_ids, *, max_tile_rows=512, tile_bytes=2 << 20):
    """JAX/Pallas equivalent of UnpadSequences.forward -> (padded, padding_mask)."""
    batch = jnp.asarray(batch)
    N, D = batch.shape

    # --- glue: group structure (G, L) is data-dependent (torch.unique /
    # nested_tensor produce data-dependent shapes), so tables are built
    # host-side and cached per sequence_ids value.
    # TODO(synk): a fully jittable variant needs static G_max / L_max bounds.
    seq_np = np.asarray(sequence_ids)
    order, starts, counts, dest, G, L = _group_tables(seq_np)

    # L-tile size: multiple of 32 rows (sublane-dense for f32/bf16/int8),
    # capped so one (TL, D) buffer stays ~tile_bytes -> bounded VMEM on v7x.
    itemsize = jnp.dtype(batch.dtype).itemsize
    row_bytes = max(1, D * itemsize)
    tl_cap = max(32, (tile_bytes // row_bytes) // 32 * 32)
    tl_target = max(32, min(max_tile_rows, tl_cap))
    n_lt = -(-L // tl_target)
    if n_lt == 1:
        TL = L                                   # block == full dim: always legal
    else:
        TL = _round_up(-(-L // n_lt), 32)
        n_lt = -(-L // TL)
    L_span = n_lt * TL

    # Pre-permute so each group's rows are contiguous; append L_span zero rows
    # so the fixed-size (TL, D) slab DMA never reads out of bounds.
    order_dev = jnp.asarray(order)
    perm = jnp.take(batch, order_dev, axis=0)                       # (N, D)
    src = jnp.concatenate([perm, jnp.zeros((L_span, D), batch.dtype)], axis=0)

    kernel = functools.partial(_pack_kernel, tl=TL)
    padded = pl.pallas_call(
        kernel,
        out_shape=jax.ShapeDtypeStruct((G, L, D), batch.dtype),
        grid_spec=pltpu.PrefetchScalarGridSpec(
            num_scalar_prefetch=2,                                  # starts, counts
            grid=(G, n_lt),
            in_specs=[pl.BlockSpec(memory_space=pl.ANY)],           # src stays in HBM
            out_specs=pl.BlockSpec(
                (1, TL, D), lambda g, lt, starts, counts: (g, lt, 0)),
            scratch_shapes=[
                pltpu.VMEM((TL, D), batch.dtype),
                pltpu.SemaphoreType.DMA(()),
            ],
        ),
        compiler_params=pltpu.CompilerParams(
            dimension_semantics=("parallel", "arbitrary"),
        ),
    )(jnp.asarray(starts), jnp.asarray(counts), src)

    # padding_mask, hoisted out of the kernel: pad slots are True; valid slots
    # are True iff the source row itself is all-zero (matches torch semantics).
    row_zero = jnp.all(perm == 0, axis=-1)                          # (N,)
    mask = (jnp.ones((G * L,), jnp.bool_)
            .at[jnp.asarray(dest)].set(row_zero)
            .reshape(G, L))
    return padded, mask


if __name__ == "__main__":
    key = jax.random.PRNGKey(0)
    N, D = 8, 128
    batch = jax.random.normal(key, (N, D), dtype=jnp.float32)
    batch = batch.at[4].set(0.0)          # an all-zero *valid* row -> mask True
    sequence_ids = jnp.array([3, 1, 3, 2, 1, 3, 2, 3], dtype=jnp.int32)

    padded, mask = unpad_sequences(batch, sequence_ids)
    padded, mask = jax.block_until_ready((padded, mask))

    # pure-numpy reference check (mirrors the torch semantics)
    b_np = np.asarray(batch)
    s_np = np.asarray(sequence_ids)
    uniq, inv = np.unique(s_np, return_inverse=True)
    groups = [np.nonzero(inv == g)[0] for g in range(len(uniq))]
    L = max(len(g) for g in groups)
    ref_padded = np.zeros((len(uniq), L, D), dtype=b_np.dtype)
    for g, rows in enumerate(groups):
        ref_padded[g, : len(rows)] = b_np[rows]
    ref_mask = np.all(ref_padded == 0, axis=-1)

    np.testing.assert_array_equal(np.asarray(padded), ref_padded)
    np.testing.assert_array_equal(np.asarray(mask), ref_mask)

    print("KERNEL_OK")
</pallas_src>

<mosaic_0001>
module attributes {stable_mosaic.version = 11 : i64} {
  func.func @_pack_kernel(%arg0: i32, %arg1: i32, %arg2: memref<3xi32, #tpu.memory_space<smem>>, %arg3: memref<3xi32, #tpu.memory_space<smem>>, %arg4: memref<12x128xf32, #tpu.memory_space<any>>, %arg5: memref<1x4x128xf32, #tpu.memory_space<vmem>>, %arg6: memref<4x128xf32, #tpu.memory_space<vmem>>, %arg7: memref<!tpu.dma_semaphore, #tpu.memory_space<semaphore_mem>>) attributes {dimension_semantics = [#tpu.dimension_semantics<parallel>, #tpu.dimension_semantics<arbitrary>], iteration_bounds = array<i64: 3, 1>, scalar_prefetch = 2 : i64, scratch_operands = 2 : i64, tpu.core_type = #tpu.core_type<tc>, window_params = [{}, {transform_indices = @transform_1, window_bounds = array<i64: 1, 4, 128>}]} {
    %0 = arith.index_cast %arg0 : i32 to index
    %1 = memref.load %arg2[%0] : memref<3xi32, #tpu.memory_space<smem>>
    %c4_i32 = arith.constant 4 : i32
    %2 = arith.muli %arg1, %c4_i32 : i32
    %3 = arith.addi %1, %2 : i32
    %c0_i32 = arith.constant 0 : i32
    %4 = tpu.memref_slice %arg4[%3, %c0_i32] : memref<12x128xf32, #tpu.memory_space<any>> -> memref<4x128xf32, #tpu.memory_space<any>>
    tpu.enqueue_dma source(%4 : memref<4x128xf32, #tpu.memory_space<any>>) target(%arg6 : memref<4x128xf32, #tpu.memory_space<vmem>>) target_semaphore(%arg7 : memref<!tpu.dma_semaphore, #tpu.memory_space<semaphore_mem>>)
    %c0_i32_0 = arith.constant 0 : i32
    %5 = tpu.memref_slice %arg4[%3, %c0_i32_0] : memref<12x128xf32, #tpu.memory_space<any>> -> memref<4x128xf32, #tpu.memory_space<any>>
    tpu.wait_dma2 semaphore(%arg7 : memref<!tpu.dma_semaphore, #tpu.memory_space<semaphore_mem>>) src(%5 : memref<4x128xf32, #tpu.memory_space<any>>) dst(%arg6 : memref<4x128xf32, #tpu.memory_space<vmem>>)
    %6 = tpu.iota {dimensions = array<i32: 0>} : vector<4x128xi32>
    %c4_i32_1 = arith.constant 4 : i32
    %7 = arith.muli %arg1, %c4_i32_1 : i32
    %8 = vector.broadcast %7 : i32 to vector<4x128xi32>
    %9 = arith.addi %6, %8 : vector<4x128xi32>
    %10 = arith.index_cast %arg0 : i32 to index
    %11 = memref.load %arg3[%10] : memref<3xi32, #tpu.memory_space<smem>>
    %12 = vector.broadcast %11 : i32 to vector<4x128xi32>
    %13 = arith.cmpi slt, %9, %12 : vector<4x128xi32>
    %c0 = arith.constant 0 : index
    %c0_2 = arith.constant 0 : index
    %14 = vector.load %arg6[%c0, %c0_2] : memref<4x128xf32, #tpu.memory_space<vmem>>, vector<4x128xf32>
    %cst = arith.constant 0.000000e+00 : f32
    %15 = vector.broadcast %cst : f32 to vector<4x128xf32>
    %16 = arith.select %13, %14, %15 : vector<4x128xi1>, vector<4x128xf32>
    %c0_3 = arith.constant 0 : index
    %c0_4 = arith.constant 0 : index
    %c0_5 = arith.constant 0 : index
    %17 = vector.load %arg5[%c0_3, %c0_4, %c0_5] : memref<1x4x128xf32, #tpu.memory_space<vmem>>, vector<1x4x128xf32>
    %18 = vector.shape_cast %17 : vector<1x4x128xf32> to vector<4x128xf32>
    %19 = vector.shape_cast %16 : vector<4x128xf32> to vector<1x4x128xf32>
    tpu.vector_store %arg5[%c0_3, %c0_4, %c0_5], %19 {strides = array<i32>} : memref<1x4x128xf32, #tpu.memory_space<vmem>>, vector<1x4x128xf32>,
    return
  }
  func.func @transform_1(%arg0: i32, %arg1: i32, %arg2: memref<3xi32, #tpu.memory_space<smem>>, %arg3: memref<3xi32, #tpu.memory_space<smem>>) -> (i32, i32, i32) {
    %c0_i32 = arith.constant 0 : i32
    %c0_i32_0 = arith.constant 0 : i32
    return %arg0, %arg1, %c0_i32 : i32, i32, i32
  }
}

</mosaic_0001>

<llo_original>
// kernel: tpu_custom_call.1
$region0: #{tpu_custom_call.1}
  #allocation0 [shape = 'u32[]', space=smem, size = 0x4, offset = 0x4, fixed_abs, tag = 'smem constant byte address 0x4 - core index']
  #allocation1 [shape = 'u32[72,128]{1,0:T(1,128)}', space=vmem, size = 0x9000, scoped, tag = 'internal scratch']
  #allocation2 [shape = 'f32[4,128]{1,0:T(4,128)}', space=vmem, size = 0x800, scoped, tag = 'scratch operand']
  #allocation3 [shape = 's32[1]{0}', space=sflag, size = 0x4, scoped, tag = 'scratch operand']
  #allocation4 [shape = 's32[1]{0}', space=sflag, size = 0x4, scoped, tag = 'scoped memory for tpu_custom_call.1']
  #allocation5 [shape = 'u8[512]{0}', space=smem, size = 0x200, scoped, tag = 'prefetched SMEM operand 0']
  #allocation6 [shape = 'u8[512]{0}', space=smem, size = 0x200, scoped, tag = 'prefetched SMEM operand 1']
  #allocation9 [shape = 's32[]', space=sflag, size = 0x4, offset = 0, fixed_abs, tag = 'sflag constant byte address 0x0 - dummy sync flag']
  #allocation10 [shape = 's32[]', space=sflag, size = 0x4, offset = 0, fixed_abs, tag = 'sflag constant byte address 0x0 - dummy sync flag']
  #allocation11 [shape = 'u32[]', space=smem, size = 0x4, offset = 0x44, fixed_abs, tag = 'smem constant byte address 0x44 - assertion arg 0']
  #allocation12 [shape = 'u32[]', space=smem, size = 0x4, offset = 0x48, fixed_abs, tag = 'smem constant byte address 0x48 - assertion arg 1']
  %s0 = inlined_call_operand.hbm [shape: s32[3], index: 0, kind: input, shape index: {}]
  %s1 = inlined_call_operand.hbm [shape: s32[3], index: 1, kind: input, shape index: {}]
  %s2 = inlined_call_operand.hbm [shape: f32[12,128], index: 2, kind: input, shape index: {}]
  %s3 = inlined_call_operand.hbm [shape: f32[3,4,128], index: 3, kind: output, shape index: {}]
  %s4 = sld [smem:[#allocation0]]
  $region29: #{tpu_custom_call.1} parent=0
    _
  %s6 = ssub.s32 1, %s4
  %s7 = scalar_select 0, %s6, %s4
  %s9 = sshll.u32 %s0, 4
  %s10 = int_to_ptr.hbm [resolvable:$true] %s9
  %12 = dma.hbm_to_smem %s10, 16, [#allocation5], [#allocation4]
  %s14 = sshll.u32 %s1, 4
  %s15 = int_to_ptr.hbm [resolvable:$true] %s14
  %17 = dma.hbm_to_smem %s15, 16, [#allocation6], [#allocation4]
  %19 = dma.done [#allocation4], 32
  %20 = sfence
  $region1: #{tpu_custom_call.1} parent=0
    #allocation7 [shape = 'u8[4096]{0}', space=vmem, size = 0x1000, scoped, tag = 'output window, operand 0']
    #allocation8 [shape = 's32[2]{0}', space=sflag, size = 0x8, scoped, tag = 'scoped memory for tpu_custom_call.1']
    %21 = vsyncpa [#allocation8], 0
    %s22 = scalar_lea.sflag [#allocation8], 1
    %23 = vsyncpa %s22, 0
    loop: start=0, step=1, limit=4
    $region2: #{tpu_custom_call.1} parent=1 // loop_pre_header
      _
    $region3: #{tpu_custom_call.1} parent=1 // loop_header
      %s25 = sphi 0, %s29
      %p26 = scmp.ge.s32.totalorder %s25, 4
      %s31 = sphi 0, %s41
      %s32 = sphi 0, %s37
      %s33 = sphi 0, %s31
      %s34 = sphi 0, %s32
      %s46 = sphi 0, %s48
      %s49 = sphi 0, %s46
      %s59 = sphi 0, %s49
    $region4: #{tpu_custom_call.1} parent=1 // loop_header_branch
      %28 = sbr.rel (%p26) target = $region8
    $region5: #{tpu_custom_call.1} parent=1 // loop_body
      %s30 = ssub.s32 %s25, 1
      %s35 = sadd.s32 1, %s32
      %p36 = scmp.ge.s32.totalorder %s35, 1
      %s37 = scalar_select %p36, 0, %s35
      %s38 = sadd.s32 1, %s31
      %s39 = scalar_select %p36, %s38, %s31
      %p40 = scmp.ge.s32.totalorder %s39, 3
      %s41 = scalar_select %p40, 0, %s39
      %s42 = ssub.s32 %s31, %s41
      %s43 = ssub.s32 %s32, %s37
      %s44 = sor.u32 %s42, %s43
      %p45 = scmp.eq.s32.totalorder %s44, 0
      %s47 = sadd.s32 %s46, 1
      %s48 = scalar_select %p45, %s46, %s47
      %p50 = pneg %p45
      %p51 = scmp.eq.s32.totalorder %s25, 2
      %p52 = por %p50, %p51
      %p53 = scmp.ne.s32.totalorder %s46, %s49
      %p54 = scmp.eq.s32.totalorder %s25, 0
      %p55 = por %p53, %p54
      %p56 = scmp.ne.s32.totalorder %s46, %s49
      %p57 = scmp.eq.s32.totalorder %s30, 2
      %p58 = por %p56, %p57
      %p60 = scmp.ne.s32.totalorder %s49, %s59
      %p61 = scmp.eq.s32.totalorder %s30, 0
      %p62 = por %p60, %p61
      %p63 = scmp.lt.s32.totalorder %s25, 3
      // Predicated region
      $region9: #{tpu_custom_call.1} parent=5 // pred_check
        %p64 = pneg %p63
      $region10: #{tpu_custom_call.1} parent=5 // pred_check_branch
        %66 = sbr.rel (%p64) target = $region12
      $region11: #{tpu_custom_call.1} parent=5 // pred_region
        %p67 = pneg %p55
        %p68 = pneg %p52
        %s69 = sand.u32 %s46, 1
        %s70 = scalar_lea.sflag [#allocation8], %s69
        %s71 = sand.u32 %s46, 1
        %s72 = smul.addr %s71, 4
        %s73 = scalar_lea.vmem [#allocation7], %s72
        %s74 = sld [smem:[#allocation5 + %s31]]
        %s75 = smul.u32 %s32, 4
        %s76 = sadd.s32 %s74, %s75
        %s77 = scalar_lea.hbm %s2, %s76
        // Predicated region
        $region13: #{tpu_custom_call.1} parent=11 // pred_check
          _
        $region14: #{tpu_custom_call.1} parent=11 // pred_check_branch
          %79 = sbr.rel target = $region16
        $region15: #{tpu_custom_call.1} parent=11 // pred_region
          %80 = sst [smem:[#allocation11]] [#allocation10]
          %81 = sst [smem:[#allocation12]] [#allocation9]
        $region16: #{tpu_custom_call.1} parent=11 // pred_fallthru
          _
        %83 = shalt.err (0)
        %s85 = sshll.u32 %s77, 4
        %s86 = int_to_ptr.hbm [resolvable:$true] %s85
        %s87 = sshll.u32 [#allocation2], 4
        %s88 = int_to_ptr.vmem [resolvable:$true] %s87
        %90 = dma.hbm_to_vmem [thread:$0]  %s86, 64, %s88, [#allocation3]
        %s91 = smul.u32 4, 1
        %s92 = sshll.u32 %s91, 4
        %93 = dma.done [#allocation3], %s92
        %v94 = vlaneseq
        %v95 = vshrl.u32 %v94, 7
        %v96 = vstv %s75
        %v97 = vadd.s32 %v95, %v96
        %s98 = sld [smem:[#allocation6 + %s31]]
        %v99 = vstv %s98
        %vm100 = vcmp.lt.s32.totalorder %v97, %v99
        %v101 = vld [vmem:[#allocation2] sm:$0xf]
        %v102 = vsel %vm100, %v101, 0.0
        %103 = vst [vmem:[%s73] sm:$0xf] %v102
        %s104 = sand.u32 %s46, 1
        %s105 = scalar_lea.sflag [#allocation8], %s104
        %s106 = sand.u32 %s46, 1
        %s107 = smul.addr %s106, 4
        %s108 = scalar_lea.vmem [#allocation7], %s107
        // Predicated region
        $region17: #{tpu_custom_call.1} parent=11 // pred_check
          %p109 = pneg %p52
        $region18: #{tpu_custom_call.1} parent=11 // pred_check_branch
          %111 = sbr.rel (%p109) target = $region20
        $region19: #{tpu_custom_call.1} parent=11 // pred_region
          %113 = vsyncadd %s105, 0
          %s114 = sadd.s32 %s32, %s31
          %s115 = smul.addr %s114, 4
          %s116 = scalar_lea.hbm %s3, %s115
          %s118 = sshll.u32 %s108, 4
          %s119 = int_to_ptr.vmem [resolvable:$true] %s118
          %s120 = sshll.u32 %s116, 4
          %s121 = int_to_ptr.hbm [resolvable:$true] %s120
          %123 = dma.vmem_to_hbm [thread:$0]  %s119, 64, %s121, %s105
        $region20: #{tpu_custom_call.1} parent=11 // pred_fallthru
          _
      $region12: #{tpu_custom_call.1} parent=5 // pred_fallthru
        _
      %p124 = scmp.le.s32.totalorder 1, %s25
      // Predicated region
      $region21: #{tpu_custom_call.1} parent=5 // pred_check
        %p125 = pneg %p124
      $region22: #{tpu_custom_call.1} parent=5 // pred_check_branch
        %127 = sbr.rel (%p125) target = $region24
      $region23: #{tpu_custom_call.1} parent=5 // pred_region
        %s128 = ssub.s32 %s25, 1
        // Predicated region
        $region25: #{tpu_custom_call.1} parent=23 // pred_check
          %p129 = pneg %p58
        $region26: #{tpu_custom_call.1} parent=23 // pred_check_branch
          %131 = sbr.rel (%p129) target = $region28
        $region27: #{tpu_custom_call.1} parent=23 // pred_region
          %s132 = sand.u32 %s49, 1
          %s133 = scalar_lea.sflag [#allocation8], %s132
          %s134 = sand.u32 %s49, 1
          %s135 = smul.addr %s134, 4
          %s136 = scalar_lea.vmem [#allocation7], %s135
          %138 = dma.done %s133, 64
        $region28: #{tpu_custom_call.1} parent=23 // pred_fallthru
          _
      $region24: #{tpu_custom_call.1} parent=5 // pred_fallthru
        _
    $region6: #{tpu_custom_call.1} parent=1 // loop_footer
      %s29 = sadd.s32 1, %s25
    $region7: #{tpu_custom_call.1} parent=1 // loop_footer_branch
      %24 = sbr.rel target = $region3
    $region8: #{tpu_custom_call.1} parent=1 // loop_exit
      _
    %139 = vsyncpa [#allocation8], 1
    %s140 = scalar_lea.sflag [#allocation8], 1
    %141 = vsyncpa %s140, 1
  %142 = vsyncmov [#allocation3]
  %s143 = vpop.sfrf %142
  %p144 = scmp.eq.s32.totalorder %s143, 0
  %p145 = pneg %p144
  %147 = shalt.err (%p145)

</llo_original>
